<compile_context>
chip_gen: v5e
topology: v5e:2x2
jax: 0.10.0
libtpu: 0.0.40
codegen_flags: <defaults>
</compile_context>

<pallas_src>
import functools

import jax
import jax.numpy as jnp
from jax.experimental import pallas as pl
from jax.experimental.pallas import tpu as pltpu


_LANE = 128
_SUBLANE = 8
_TB_MAX = 512            # target batch tile (rows); rounded to 8 sublanes
_NEG_INF = -1e30         # finite mask for padded class lanes (avoids inf-inf NaNs)


def _round_up(n, m):
    return ((n + m - 1) // m) * m


# ---------------------------------------------------------------------------
# Fused kernel: features matmul + ReLU + all heads matmul + per-head log-softmax
# ---------------------------------------------------------------------------

def _fused_kernel(x_ref, w1_ref, b1_ref, wh_ref, bh_ref, o_ref, *,
                  num_heads, nc_pad):
    # x_ref : (TB, size_input)               bf16
    # w1_ref: (size_input, hidden_pad)       bf16  (padded hidden cols = 0)
    # b1_ref: (1, hidden_pad)                f32   (padded hidden cols = 0)
    # wh_ref: (hidden_pad, num_heads*nc_pad) bf16  (padded rows/cols = 0)
    # bh_ref: (1, num_heads*nc_pad)          f32   (padded class lanes = -1e30)
    # o_ref : (TB, num_heads*nc_pad)         f32
    h = jnp.dot(x_ref[...], w1_ref[...], preferred_element_type=jnp.float32)
    h = jnp.maximum(h + b1_ref[...], 0.0)            # bias + ReLU in f32
    h_bf16 = h.astype(jnp.bfloat16)

    logits = jnp.dot(h_bf16, wh_ref[...], preferred_element_type=jnp.float32)
    logits = logits + bh_ref[...]

    # Per-head numerically-stable log-softmax over its own 128-aligned segment,
    # stored straight into the output slab (static, lane-aligned slices ->
    # unmasked vst; no concat temporary).  Padded lanes carry -1e30 logits so
    # exp() underflows to exactly 0 and max / normalizer are unaffected.
    for i in range(num_heads):
        lo = i * nc_pad
        seg = logits[:, lo:lo + nc_pad]
        m = jnp.max(seg, axis=-1, keepdims=True)
        shifted = seg - m
        lse = jnp.log(jnp.sum(jnp.exp(shifted), axis=-1, keepdims=True))
        o_ref[:, lo:lo + nc_pad] = (shifted - lse).astype(o_ref.dtype)


# ---------------------------------------------------------------------------
# pallas_call wrapper
# ---------------------------------------------------------------------------

def _fused_forward(x_pad, w1, b1, wh, bh, *, num_heads, nc_pad, tb):
    bp, size_input = x_pad.shape
    hidden_pad = w1.shape[1]
    nc_total = wh.shape[1]
    grid = (bp // tb,)

    kernel = functools.partial(_fused_kernel, num_heads=num_heads, nc_pad=nc_pad)

    flops = 2 * bp * size_input * hidden_pad + 2 * bp * hidden_pad * nc_total
    bytes_accessed = (x_pad.size * 2 + w1.size * 2 + wh.size * 2
                      + b1.size * 4 + bh.size * 4 + bp * nc_total * 4)
    cost = pl.CostEstimate(flops=flops,
                           transcendentals=bp * nc_total,
                           bytes_accessed=bytes_accessed)

    return pl.pallas_call(
        kernel,
        out_shape=jax.ShapeDtypeStruct((bp, nc_total), jnp.float32),
        grid=grid,
        in_specs=[
            # x: tiled along batch.
            pl.BlockSpec((tb, size_input), lambda i: (i, 0)),
            # Weights / biases: constant block index -> DMA'd once, resident.
            pl.BlockSpec((size_input, hidden_pad), lambda i: (0, 0)),
            pl.BlockSpec((1, hidden_pad), lambda i: (0, 0)),
            pl.BlockSpec((hidden_pad, nc_total), lambda i: (0, 0)),
            pl.BlockSpec((1, nc_total), lambda i: (0, 0)),
        ],
        out_specs=pl.BlockSpec((tb, nc_total), lambda i: (i, 0)),
        compiler_params=pltpu.CompilerParams(
            dimension_semantics=("parallel",)),
        cost_estimate=cost,
    )(x_pad, w1, b1, wh, bh)


def _choose_batch_tile(batch):
    """Pad batch to 8 sublanes and pick a batch tile.

    Targets tiles of up to _TB_MAX rows (per-step overhead amortization), and
    when the padded batch has >= 2 tiles' worth of sublanes ensures the grid
    has at least 2 steps so v7x's second TensorCore gets work.
    """
    bp = _round_up(batch, _SUBLANE)
    if bp >= 2 * _SUBLANE:
        tb = min(_TB_MAX, _round_up(-(-bp // 2), _SUBLANE))
    else:
        tb = bp
    bp = _round_up(bp, tb)
    return bp, tb


@functools.partial(jax.jit, static_argnames=("nums_classes",))
def sdmd_mlp_forward(x, packed, nums_classes):
    """Full forward pass. x: (B, C, H, W); returns tuple of (B, nc_i) log-probs."""
    B = x.shape[0]
    x_flat = x.reshape(B, -1).astype(jnp.bfloat16)   # == torch.flatten(x, 1)

    bp, tb = _choose_batch_tile(B)
    if bp == B:
        x_pad = x_flat                                # no extra HBM copy
    else:
        x_pad = jnp.pad(x_flat, ((0, bp - B), (0, 0)))

    num_heads = len(nums_classes)
    nc_pad = packed["wh"].shape[1] // num_heads

    slab = _fused_forward(x_pad, packed["w1"], packed["b1"],
                          packed["wh"], packed["bh"],
                          num_heads=num_heads, nc_pad=nc_pad, tb=tb)
    return tuple(slab[:B, i * nc_pad:i * nc_pad + nc]
                 for i, nc in enumerate(nums_classes))


# ---------------------------------------------------------------------------
# Parameter init (mirrors nn.Linear uniform(-1/sqrt(fan_in), ...)) + packing
# ---------------------------------------------------------------------------

def init_params(key, size_input, size_hidden, nums_classes):
    # Weights stored (in, out) == transpose of nn.Linear's (out, in).
    k1, k2, kh = jax.random.split(key, 3)
    bound1 = 1.0 / jnp.sqrt(size_input)
    w1 = jax.random.uniform(k1, (size_input, size_hidden), jnp.float32, -bound1, bound1)
    b1 = jax.random.uniform(k2, (size_hidden,), jnp.float32, -bound1, bound1)

    head_w, head_b = [], []
    bound2 = 1.0 / jnp.sqrt(size_hidden)
    for i, nc in enumerate(nums_classes):
        kw, kb = jax.random.split(jax.random.fold_in(kh, i))
        head_w.append(jax.random.uniform(kw, (size_hidden, nc), jnp.float32, -bound2, bound2))
        head_b.append(jax.random.uniform(kb, (nc,), jnp.float32, -bound2, bound2))
    return {"w1": w1, "b1": b1, "head_w": tuple(head_w), "head_b": tuple(head_b)}


def pack_params(params, nums_classes):
    """One-time padding / concatenation into the lane-dense fused-kernel layout."""
    size_input, size_hidden = params["w1"].shape
    # Do NOT pad hidden beyond 128: MXU has slack here; wider N only adds
    # zero-column FLOPs on the actual bottleneck (DMA + per-step overhead).
    hidden_pad = _round_up(max(size_hidden, _LANE), _LANE)
    nc_pad = _round_up(max(max(nums_classes), _LANE), _LANE)
    num_heads = len(nums_classes)

    w1 = jnp.zeros((size_input, hidden_pad), jnp.float32)
    w1 = w1.at[:, :size_hidden].set(params["w1"])
    b1 = jnp.zeros((1, hidden_pad), jnp.float32)
    b1 = b1.at[:, :size_hidden].set(params["b1"].reshape(1, -1))

    wh = jnp.zeros((hidden_pad, num_heads * nc_pad), jnp.float32)
    bh = jnp.full((1, num_heads * nc_pad), _NEG_INF, jnp.float32)
    for i, (w, b, nc) in enumerate(zip(params["head_w"], params["head_b"], nums_classes)):
        wh = wh.at[:size_hidden, i * nc_pad:i * nc_pad + nc].set(w)
        bh = bh.at[:, i * nc_pad:i * nc_pad + nc].set(b.reshape(1, -1))

    return {"w1": w1.astype(jnp.bfloat16), "b1": b1,
            "wh": wh.astype(jnp.bfloat16), "bh": bh}


# ---------------------------------------------------------------------------
# Main
# ---------------------------------------------------------------------------

if __name__ == "__main__":
    key = jax.random.PRNGKey(0)
    kx, kp = jax.random.split(key)

    # Small shapes consistent with the module: x is (B, C, H, W) -> size_input = C*H*W
    B, C, H, W = 2, 4, 16, 16
    size_input = C * H * W          # 1024
    size_hidden = 32
    nums_classes = (10, 5)

    x = jax.random.normal(kx, (B, C, H, W), jnp.float32)
    params = init_params(kp, size_input, size_hidden, nums_classes)
    packed = pack_params(params, nums_classes)

    outs = sdmd_mlp_forward(x, packed, nums_classes)
    outs = jax.block_until_ready(outs)

    # Reference in plain JAX with the identical dtype flow (bf16 weights/inputs,
    # f32 accumulation + elementwise), per-head log-softmax over real classes.
    x_flat = x.reshape(B, -1).astype(jnp.bfloat16)
    h_ref = jnp.maximum(
        jnp.dot(x_flat, packed["w1"], preferred_element_type=jnp.float32)
        + packed["b1"], 0.0)
    logits_ref = jnp.dot(h_ref.astype(jnp.bfloat16), packed["wh"],
                         preferred_element_type=jnp.float32) + packed["bh"]
    nc_pad = packed["wh"].shape[1] // len(nums_classes)

    ok = True
    for i, nc in enumerate(nums_classes):
        ref = jax.nn.log_softmax(logits_ref[:, i * nc_pad:i * nc_pad + nc], axis=-1)
        ok = ok and bool(jnp.allclose(outs[i], ref, atol=1e-4, rtol=1e-4))
        ok = ok and outs[i].shape == (B, nc)

    if ok:
        print("KERNEL_OK")
    else:
        print("KERNEL_MISMATCH")
</pallas_src>

<mosaic_0001>
module attributes {stable_mosaic.version = 11 : i64} {
  func.func @_fused_kernel(%arg0: i32, %arg1: memref<8x1024xbf16, #tpu.memory_space<vmem>>, %arg2: memref<1024x128xbf16, #tpu.memory_space<vmem>>, %arg3: memref<1x128xf32, #tpu.memory_space<vmem>>, %arg4: memref<128x256xbf16, #tpu.memory_space<vmem>>, %arg5: memref<1x256xf32, #tpu.memory_space<vmem>>, %arg6: memref<8x256xf32, #tpu.memory_space<vmem>>) attributes {dimension_semantics = [#tpu.dimension_semantics<parallel>], iteration_bounds = array<i64: 1>, scalar_prefetch = 0 : i64, scratch_operands = 0 : i64, tpu.core_type = #tpu.core_type<tc>, window_params = [{transform_indices = @transform_0, window_bounds = array<i64: 8, 1024>}, {pipeline_mode = #tpu.pipeline_mode<synchronous>, transform_indices = @transform_1, window_bounds = array<i64: 1024, 128>}, {pipeline_mode = #tpu.pipeline_mode<synchronous>, transform_indices = @transform_2, window_bounds = array<i64: 1, 128>}, {pipeline_mode = #tpu.pipeline_mode<synchronous>, transform_indices = @transform_3, window_bounds = array<i64: 128, 256>}, {pipeline_mode = #tpu.pipeline_mode<synchronous>, transform_indices = @transform_4, window_bounds = array<i64: 1, 256>}, {transform_indices = @transform_5, window_bounds = array<i64: 8, 256>}]} {
    %c0 = arith.constant 0 : index
    %c0_0 = arith.constant 0 : index
    %0 = vector.load %arg1[%c0, %c0_0] : memref<8x1024xbf16, #tpu.memory_space<vmem>>, vector<8x1024xbf16>
    %c0_1 = arith.constant 0 : index
    %c0_2 = arith.constant 0 : index
    %1 = vector.load %arg2[%c0_1, %c0_2] : memref<1024x128xbf16, #tpu.memory_space<vmem>>, vector<1024x128xbf16>
    %cst = arith.constant dense<0.000000e+00> : vector<8x128xf32>
    %2 = tpu.matmul %0, %1, %cst {dimension_numbers = #tpu.dot_dimension_numbers<[1], [0], [0], [1], [0, 0, 1, 1], [], []>} : vector<8x1024xbf16>, vector<1024x128xbf16>, vector<8x128xf32> -> vector<8x128xf32>
    %c0_3 = arith.constant 0 : index
    %c0_4 = arith.constant 0 : index
    %3 = vector.load %arg3[%c0_3, %c0_4] : memref<1x128xf32, #tpu.memory_space<vmem>>, vector<1x128xf32>
    %4 = vector.broadcast %3 : vector<1x128xf32> to vector<8x128xf32>
    %5 = arith.addf %2, %4 : vector<8x128xf32>
    %cst_5 = arith.constant 0.000000e+00 : f32
    %6 = vector.broadcast %cst_5 : f32 to vector<8x128xf32>
    %7 = arith.maximumf %5, %6 : vector<8x128xf32>
    %8 = arith.truncf %7 : vector<8x128xf32> to vector<8x128xbf16>
    %c0_6 = arith.constant 0 : index
    %c0_7 = arith.constant 0 : index
    %9 = vector.load %arg4[%c0_6, %c0_7] : memref<128x256xbf16, #tpu.memory_space<vmem>>, vector<128x256xbf16>
    %cst_8 = arith.constant dense<0.000000e+00> : vector<8x256xf32>
    %10 = tpu.matmul %8, %9, %cst_8 {dimension_numbers = #tpu.dot_dimension_numbers<[1], [0], [0], [1], [0, 0, 1, 1], [], []>} : vector<8x128xbf16>, vector<128x256xbf16>, vector<8x256xf32> -> vector<8x256xf32>
    %c0_9 = arith.constant 0 : index
    %c0_10 = arith.constant 0 : index
    %11 = vector.load %arg5[%c0_9, %c0_10] : memref<1x256xf32, #tpu.memory_space<vmem>>, vector<1x256xf32>
    %12 = vector.broadcast %11 : vector<1x256xf32> to vector<8x256xf32>
    %13 = arith.addf %10, %12 : vector<8x256xf32>
    %14 = vector.extract_strided_slice %13 {offsets = [0, 0], sizes = [8, 128], strides = [1, 1]} : vector<8x256xf32> to vector<8x128xf32>
    %cst_11 = arith.constant dense<0xFF800000> : vector<8xf32>
    %15 = vector.multi_reduction <maximumf>, %14, %cst_11 [1] : vector<8x128xf32> to vector<8xf32>
    %16 = vector.shape_cast %15 : vector<8xf32> to vector<8x1xf32>
    %17 = vector.broadcast %16 : vector<8x1xf32> to vector<8x128xf32>
    %18 = arith.subf %14, %17 : vector<8x128xf32>
    %19 = math.exp %18 : vector<8x128xf32>
    %cst_12 = arith.constant dense<0.000000e+00> : vector<8xf32>
    %20 = vector.multi_reduction <add>, %19, %cst_12 [1] : vector<8x128xf32> to vector<8xf32>
    %21 = vector.shape_cast %20 : vector<8xf32> to vector<8x1xf32>
    %22 = math.log %21 : vector<8x1xf32>
    %23 = vector.broadcast %22 : vector<8x1xf32> to vector<8x128xf32>
    %24 = arith.subf %18, %23 : vector<8x128xf32>
    %c0_13 = arith.constant 0 : index
    %c0_14 = arith.constant 0 : index
    %25 = vector.load %arg6[%c0_13, %c0_14] : memref<8x256xf32, #tpu.memory_space<vmem>>, vector<8x128xf32>
    tpu.vector_store %arg6[%c0_13, %c0_14], %24 {strides = array<i32>} : memref<8x256xf32, #tpu.memory_space<vmem>>, vector<8x128xf32>,
    %26 = vector.extract_strided_slice %13 {offsets = [0, 128], sizes = [8, 128], strides = [1, 1]} : vector<8x256xf32> to vector<8x128xf32>
    %cst_15 = arith.constant dense<0xFF800000> : vector<8xf32>
    %27 = vector.multi_reduction <maximumf>, %26, %cst_15 [1] : vector<8x128xf32> to vector<8xf32>
    %28 = vector.shape_cast %27 : vector<8xf32> to vector<8x1xf32>
    %29 = vector.broadcast %28 : vector<8x1xf32> to vector<8x128xf32>
    %30 = arith.subf %26, %29 : vector<8x128xf32>
    %31 = math.exp %30 : vector<8x128xf32>
    %cst_16 = arith.constant dense<0.000000e+00> : vector<8xf32>
    %32 = vector.multi_reduction <add>, %31, %cst_16 [1] : vector<8x128xf32> to vector<8xf32>
    %33 = vector.shape_cast %32 : vector<8xf32> to vector<8x1xf32>
    %34 = math.log %33 : vector<8x1xf32>
    %35 = vector.broadcast %34 : vector<8x1xf32> to vector<8x128xf32>
    %36 = arith.subf %30, %35 : vector<8x128xf32>
    %c0_17 = arith.constant 0 : index
    %c128 = arith.constant 128 : index
    %37 = vector.load %arg6[%c0_17, %c128] : memref<8x256xf32, #tpu.memory_space<vmem>>, vector<8x128xf32>
    tpu.vector_store %arg6[%c0_17, %c128], %36 {strides = array<i32>} : memref<8x256xf32, #tpu.memory_space<vmem>>, vector<8x128xf32>,
    return
  }
  func.func @transform_0(%arg0: i32) -> (i32, i32) {
    %c0_i32 = arith.constant 0 : i32
    %c0_i32_0 = arith.constant 0 : i32
    return %arg0, %c0_i32 : i32, i32
  }
  func.func @transform_1(%arg0: i32) -> (i32, i32) {
    %c0_i32 = arith.constant 0 : i32
    %c0_i32_0 = arith.constant 0 : i32
    %c0_i32_1 = arith.constant 0 : i32
    return %c0_i32, %c0_i32_0 : i32, i32
  }
  func.func @transform_2(%arg0: i32) -> (i32, i32) {
    %c0_i32 = arith.constant 0 : i32
    %c0_i32_0 = arith.constant 0 : i32
    %c0_i32_1 = arith.constant 0 : i32
    return %c0_i32, %c0_i32_0 : i32, i32
  }
  func.func @transform_3(%arg0: i32) -> (i32, i32) {
    %c0_i32 = arith.constant 0 : i32
    %c0_i32_0 = arith.constant 0 : i32
    %c0_i32_1 = arith.constant 0 : i32
    return %c0_i32, %c0_i32_0 : i32, i32
  }
  func.func @transform_4(%arg0: i32) -> (i32, i32) {
    %c0_i32 = arith.constant 0 : i32
    %c0_i32_0 = arith.constant 0 : i32
    %c0_i32_1 = arith.constant 0 : i32
    return %c0_i32, %c0_i32_0 : i32, i32
  }
  func.func @transform_5(%arg0: i32) -> (i32, i32) {
    %c0_i32 = arith.constant 0 : i32
    %c0_i32_0 = arith.constant 0 : i32
    return %arg0, %c0_i32 : i32, i32
  }
}

</mosaic_0001>

<llo_original>
// kernel: sdmd_mlp_forward.1
$region0: #{sdmd_mlp_forward.1}
  #allocation0 [shape = 'u32[]', space=smem, size = 0x4, offset = 0x4, fixed_abs, tag = 'smem constant byte address 0x4 - core index']
  #allocation1 [shape = 'u32[72,128]{1,0:T(1,128)}', space=vmem, size = 0x9000, scoped, tag = 'internal scratch']
  %s0 = inlined_call_operand.vmem [shape: bf16[8,1024], index: 0, kind: input, shape index: {}]
  %s1 = inlined_call_operand.hbm [shape: bf16[1024,128], index: 1, kind: input, shape index: {}]
  %s2 = inlined_call_operand.vmem [shape: f32[1,128], index: 2, kind: input, shape index: {}]
  %s3 = inlined_call_operand.vmem [shape: bf16[128,256], index: 3, kind: input, shape index: {}]
  %s4 = inlined_call_operand.vmem [shape: f32[1,256], index: 4, kind: input, shape index: {}]
  %s5 = inlined_call_operand.vmem [shape: f32[8,256], index: 5, kind: output, shape index: {}]
  %s6 = sld [smem:[#allocation0]]
  $region34: #{sdmd_mlp_forward.1} parent=0
    _
  %s8 = ssub.s32 1, %s6
  %s9 = scalar_select 0, %s8, %s6
  $region1: #{sdmd_mlp_forward.1} parent=0
    #allocation2 [shape = 'u8[262144]{0}', space=vmem, size = 0x40000, scoped, tag = 'input window, operand 1, single buffered']
    #allocation3 [shape = 's32[1]{0}', space=sflag, size = 0x4, scoped, tag = 'scoped memory for sdmd_mlp_forward.1']
    %10 = vsyncpa [#allocation3], 0
    // Predicated region
    $region2: #{sdmd_mlp_forward.1} parent=1 // pred_check
      _
    $region3: #{sdmd_mlp_forward.1} parent=1 // pred_check_branch
      %12 = sbr.rel (0) target = $region5
    $region4: #{sdmd_mlp_forward.1} parent=1 // pred_region
      _
    $region5: #{sdmd_mlp_forward.1} parent=1 // pred_fallthru
      _
    // Predicated region
    $region6: #{sdmd_mlp_forward.1} parent=1 // pred_check
      _
    $region7: #{sdmd_mlp_forward.1} parent=1 // pred_check_branch
      %14 = sbr.rel (0) target = $region9
    $region8: #{sdmd_mlp_forward.1} parent=1 // pred_region
      %16 = vsyncadd [#allocation3], 0
      %s17 = sshll.u32 %s1, 4
      %s18 = int_to_ptr.hbm [resolvable:$true] %s17
      %s19 = sshll.u32 [#allocation2], 4
      %s20 = int_to_ptr.vmem [resolvable:$true] %s19
      %25 = dma.hbm_to_vmem [thread:$0]  %s18, 8192, %s20, [#allocation3], 64, 64, 4
    $region9: #{sdmd_mlp_forward.1} parent=1 // pred_fallthru
      _
    // Predicated region
    $region10: #{sdmd_mlp_forward.1} parent=1 // pred_check
      _
    $region11: #{sdmd_mlp_forward.1} parent=1 // pred_check_branch
      %27 = sbr.rel (0) target = $region13
    $region12: #{sdmd_mlp_forward.1} parent=1 // pred_region
      _
    $region13: #{sdmd_mlp_forward.1} parent=1 // pred_fallthru
      _
    // Predicated region
    $region14: #{sdmd_mlp_forward.1} parent=1 // pred_check
      _
    $region15: #{sdmd_mlp_forward.1} parent=1 // pred_check_branch
      %29 = sbr.rel (0) target = $region17
    $region16: #{sdmd_mlp_forward.1} parent=1 // pred_region
      _
    $region17: #{sdmd_mlp_forward.1} parent=1 // pred_fallthru
      _
    // Predicated region
    $region18: #{sdmd_mlp_forward.1} parent=1 // pred_check
      _
    $region19: #{sdmd_mlp_forward.1} parent=1 // pred_check_branch
      %31 = sbr.rel (0) target = $region21
    $region20: #{sdmd_mlp_forward.1} parent=1 // pred_region
      _
    $region21: #{sdmd_mlp_forward.1} parent=1 // pred_fallthru
      _
    // Predicated region
    $region22: #{sdmd_mlp_forward.1} parent=1 // pred_check
      _
    $region23: #{sdmd_mlp_forward.1} parent=1 // pred_check_branch
      %33 = sbr.rel (0) target = $region25
    $region24: #{sdmd_mlp_forward.1} parent=1 // pred_region
      %35 = dma.done [#allocation3], 8192
    $region25: #{sdmd_mlp_forward.1} parent=1 // pred_fallthru
      _
    %v36 = vld [vmem:[%s0] sm:$0xff]
    %v37 = vld [vmem:[%s0 + $0x8] sm:$0xff]
    %v38 = vld [vmem:[%s0 + $0x10] sm:$0xff]
    %v39 = vld [vmem:[%s0 + $0x18] sm:$0xff]
    %v40 = vld [vmem:[#allocation2] sm:$0xf]
    %v41 = vld [vmem:[#allocation2 + $0x4] sm:$0xf]
    %v42 = vld [vmem:[#allocation2 + $0x8] sm:$0xf]
    %v43 = vld [vmem:[#allocation2 + $0xc] sm:$0xf]
    %v44 = vld [vmem:[#allocation2 + $0x10] sm:$0xf]
    %v45 = vld [vmem:[#allocation2 + $0x14] sm:$0xf]
    %v46 = vld [vmem:[#allocation2 + $0x18] sm:$0xf]
    %v47 = vld [vmem:[#allocation2 + $0x1c] sm:$0xf]
    %v48 = vld [vmem:[#allocation2 + $0x20] sm:$0xf]
    %v49 = vld [vmem:[#allocation2 + $0x24] sm:$0xf]
    %v50 = vld [vmem:[#allocation2 + $0x28] sm:$0xf]
    %v51 = vld [vmem:[#allocation2 + $0x2c] sm:$0xf]
    %v52 = vld [vmem:[#allocation2 + $0x30] sm:$0xf]
    %v53 = vld [vmem:[#allocation2 + $0x34] sm:$0xf]
    %v54 = vld [vmem:[#allocation2 + $0x38] sm:$0xf]
    %v55 = vld [vmem:[#allocation2 + $0x3c] sm:$0xf]
    %v56 = vld [vmem:[#allocation2 + $0x40] sm:$0xf]
    %v57 = vld [vmem:[#allocation2 + $0x44] sm:$0xf]
    %v58 = vld [vmem:[#allocation2 + $0x48] sm:$0xf]
    %v59 = vld [vmem:[#allocation2 + $0x4c] sm:$0xf]
    %v60 = vld [vmem:[#allocation2 + $0x50] sm:$0xf]
    %v61 = vld [vmem:[#allocation2 + $0x54] sm:$0xf]
    %v62 = vld [vmem:[#allocation2 + $0x58] sm:$0xf]
    %v63 = vld [vmem:[#allocation2 + $0x5c] sm:$0xf]
    %v64 = vld [vmem:[#allocation2 + $0x60] sm:$0xf]
    %v65 = vld [vmem:[#allocation2 + $0x64] sm:$0xf]
    %v66 = vld [vmem:[#allocation2 + $0x68] sm:$0xf]
    %v67 = vld [vmem:[#allocation2 + $0x6c] sm:$0xf]
    %v68 = vld [vmem:[#allocation2 + $0x70] sm:$0xf]
    %v69 = vld [vmem:[#allocation2 + $0x74] sm:$0xf]
    %v70 = vld [vmem:[#allocation2 + $0x78] sm:$0xf]
    %v71 = vld [vmem:[#allocation2 + $0x7c] sm:$0xf]
    %v72 = vld [vmem:[#allocation2 + $0x80] sm:$0xf]
    %v73 = vld [vmem:[#allocation2 + $0x84] sm:$0xf]
    %v74 = vld [vmem:[#allocation2 + $0x88] sm:$0xf]
    %v75 = vld [vmem:[#allocation2 + $0x8c] sm:$0xf]
    %v76 = vld [vmem:[#allocation2 + $0x90] sm:$0xf]
    %v77 = vld [vmem:[#allocation2 + $0x94] sm:$0xf]
    %v78 = vld [vmem:[#allocation2 + $0x98] sm:$0xf]
    %v79 = vld [vmem:[#allocation2 + $0x9c] sm:$0xf]
    %v80 = vld [vmem:[#allocation2 + $0xa0] sm:$0xf]
    %v81 = vld [vmem:[#allocation2 + $0xa4] sm:$0xf]
    %v82 = vld [vmem:[#allocation2 + $0xa8] sm:$0xf]
    %v83 = vld [vmem:[#allocation2 + $0xac] sm:$0xf]
    %v84 = vld [vmem:[#allocation2 + $0xb0] sm:$0xf]
    %v85 = vld [vmem:[#allocation2 + $0xb4] sm:$0xf]
    %v86 = vld [vmem:[#allocation2 + $0xb8] sm:$0xf]
    %v87 = vld [vmem:[#allocation2 + $0xbc] sm:$0xf]
    %v88 = vld [vmem:[#allocation2 + $0xc0] sm:$0xf]
    %v89 = vld [vmem:[#allocation2 + $0xc4] sm:$0xf]
    %v90 = vld [vmem:[#allocation2 + $0xc8] sm:$0xf]
    %v91 = vld [vmem:[#allocation2 + $0xcc] sm:$0xf]
    %v92 = vld [vmem:[#allocation2 + $0xd0] sm:$0xf]
    %v93 = vld [vmem:[#allocation2 + $0xd4] sm:$0xf]
    %v94 = vld [vmem:[#allocation2 + $0xd8] sm:$0xf]
    %v95 = vld [vmem:[#allocation2 + $0xdc] sm:$0xf]
    %v96 = vld [vmem:[#allocation2 + $0xe0] sm:$0xf]
    %v97 = vld [vmem:[#allocation2 + $0xe4] sm:$0xf]
    %v98 = vld [vmem:[#allocation2 + $0xe8] sm:$0xf]
    %v99 = vld [vmem:[#allocation2 + $0xec] sm:$0xf]
    %v100 = vld [vmem:[#allocation2 + $0xf0] sm:$0xf]
    %v101 = vld [vmem:[#allocation2 + $0xf4] sm:$0xf]
    %v102 = vld [vmem:[#allocation2 + $0xf8] sm:$0xf]
    %v103 = vld [vmem:[#allocation2 + $0xfc] sm:$0xf]
    %v104 = vld [vmem:[#allocation2 + $0x100] sm:$0xf]
    %v105 = vld [vmem:[#allocation2 + $0x104] sm:$0xf]
    %v106 = vld [vmem:[#allocation2 + $0x108] sm:$0xf]
    %v107 = vld [vmem:[#allocation2 + $0x10c] sm:$0xf]
    %v108 = vld [vmem:[#allocation2 + $0x110] sm:$0xf]
    %v109 = vld [vmem:[#allocation2 + $0x114] sm:$0xf]
    %v110 = vld [vmem:[#allocation2 + $0x118] sm:$0xf]
    %v111 = vld [vmem:[#allocation2 + $0x11c] sm:$0xf]
    %v112 = vld [vmem:[#allocation2 + $0x120] sm:$0xf]
    %v113 = vld [vmem:[#allocation2 + $0x124] sm:$0xf]
    %v114 = vld [vmem:[#allocation2 + $0x128] sm:$0xf]
    %v115 = vld [vmem:[#allocation2 + $0x12c] sm:$0xf]
    %v116 = vld [vmem:[#allocation2 + $0x130] sm:$0xf]
    %v117 = vld [vmem:[#allocation2 + $0x134] sm:$0xf]
    %v118 = vld [vmem:[#allocation2 + $0x138] sm:$0xf]
    %v119 = vld [vmem:[#allocation2 + $0x13c] sm:$0xf]
    %v120 = vld [vmem:[#allocation2 + $0x140] sm:$0xf]
    %v121 = vld [vmem:[#allocation2 + $0x144] sm:$0xf]
    %v122 = vld [vmem:[#allocation2 + $0x148] sm:$0xf]
    %v123 = vld [vmem:[#allocation2 + $0x14c] sm:$0xf]
    %v124 = vld [vmem:[#allocation2 + $0x150] sm:$0xf]
    %v125 = vld [vmem:[#allocation2 + $0x154] sm:$0xf]
    %v126 = vld [vmem:[#allocation2 + $0x158] sm:$0xf]
    %v127 = vld [vmem:[#allocation2 + $0x15c] sm:$0xf]
    %v128 = vld [vmem:[#allocation2 + $0x160] sm:$0xf]
    %v129 = vld [vmem:[#allocation2 + $0x164] sm:$0xf]
    %v130 = vld [vmem:[#allocation2 + $0x168] sm:$0xf]
    %v131 = vld [vmem:[#allocation2 + $0x16c] sm:$0xf]
    %v132 = vld [vmem:[#allocation2 + $0x170] sm:$0xf]
    %v133 = vld [vmem:[#allocation2 + $0x174] sm:$0xf]
    %v134 = vld [vmem:[#allocation2 + $0x178] sm:$0xf]
    %v135 = vld [vmem:[#allocation2 + $0x17c] sm:$0xf]
    %v136 = vld [vmem:[#allocation2 + $0x180] sm:$0xf]
    %v137 = vld [vmem:[#allocation2 + $0x184] sm:$0xf]
    %v138 = vld [vmem:[#allocation2 + $0x188] sm:$0xf]
    %v139 = vld [vmem:[#allocation2 + $0x18c] sm:$0xf]
    %v140 = vld [vmem:[#allocation2 + $0x190] sm:$0xf]
    %v141 = vld [vmem:[#allocation2 + $0x194] sm:$0xf]
    %v142 = vld [vmem:[#allocation2 + $0x198] sm:$0xf]
    %v143 = vld [vmem:[#allocation2 + $0x19c] sm:$0xf]
    %v144 = vld [vmem:[#allocation2 + $0x1a0] sm:$0xf]
    %v145 = vld [vmem:[#allocation2 + $0x1a4] sm:$0xf]
    %v146 = vld [vmem:[#allocation2 + $0x1a8] sm:$0xf]
    %v147 = vld [vmem:[#allocation2 + $0x1ac] sm:$0xf]
    %v148 = vld [vmem:[#allocation2 + $0x1b0] sm:$0xf]
    %v149 = vld [vmem:[#allocation2 + $0x1b4] sm:$0xf]
    %v150 = vld [vmem:[#allocation2 + $0x1b8] sm:$0xf]
    %v151 = vld [vmem:[#allocation2 + $0x1bc] sm:$0xf]
    %v152 = vld [vmem:[#allocation2 + $0x1c0] sm:$0xf]
    %v153 = vld [vmem:[#allocation2 + $0x1c4] sm:$0xf]
    %v154 = vld [vmem:[#allocation2 + $0x1c8] sm:$0xf]
    %v155 = vld [vmem:[#allocation2 + $0x1cc] sm:$0xf]
    %v156 = vld [vmem:[#allocation2 + $0x1d0] sm:$0xf]
    %v157 = vld [vmem:[#allocation2 + $0x1d4] sm:$0xf]
    %v158 = vld [vmem:[#allocation2 + $0x1d8] sm:$0xf]
    %v159 = vld [vmem:[#allocation2 + $0x1dc] sm:$0xf]
    %v160 = vld [vmem:[#allocation2 + $0x1e0] sm:$0xf]
    %v161 = vld [vmem:[#allocation2 + $0x1e4] sm:$0xf]
    %v162 = vld [vmem:[#allocation2 + $0x1e8] sm:$0xf]
    %v163 = vld [vmem:[#allocation2 + $0x1ec] sm:$0xf]
    %v164 = vld [vmem:[#allocation2 + $0x1f0] sm:$0xf]
    %v165 = vld [vmem:[#allocation2 + $0x1f4] sm:$0xf]
    %v166 = vld [vmem:[#allocation2 + $0x1f8] sm:$0xf]
    %v167 = vld [vmem:[#allocation2 + $0x1fc] sm:$0xf]
    %v168 = vld [vmem:[%s2] sm:$0x1]
    %v170 = vperm.slane %v168, 0
    %v176 = vunpack.c.l.b16 %v36
    %v177 = vunpack.c.h.b16 %v36
    %v178 = vunpack.c.l.b16 %v37
    %v179 = vunpack.c.h.b16 %v37
    %v180 = vunpack.c.l.b16 %v38
    %v181 = vunpack.c.h.b16 %v38
    %v182 = vunpack.c.l.b16 %v39
    %v183 = vunpack.c.h.b16 %v39
    %v184 = vpack.c.b16 %v176, %v176
    %v185 = vpack.c.b16 %v177, %v177
    %v186 = vpack.c.b16 %v178, %v178
    %v187 = vpack.c.b16 %v179, %v179
    %v188 = vpack.c.b16 %v180, %v180
    %v189 = vpack.c.b16 %v181, %v181
    %v190 = vpack.c.b16 %v182, %v182
    %v191 = vpack.c.b16 %v183, %v183
    %v328 = vunpack.c.l.b16 %v40
    %v329 = vunpack.c.l.b16 %v41
    %v330 = vunpack.c.l.b16 %v42
    %v331 = vunpack.c.l.b16 %v43
    %v332 = vunpack.c.l.b16 %v44
    %v333 = vunpack.c.l.b16 %v45
    %v334 = vunpack.c.l.b16 %v46
    %v335 = vunpack.c.l.b16 %v47
    %v336 = vunpack.c.l.b16 %v48
    %v337 = vunpack.c.l.b16 %v49
    %v338 = vunpack.c.l.b16 %v50
    %v339 = vunpack.c.l.b16 %v51
    %v340 = vunpack.c.l.b16 %v52
    %v341 = vunpack.c.l.b16 %v53
    %v342 = vunpack.c.l.b16 %v54
    %v343 = vunpack.c.l.b16 %v55
    %v344 = vunpack.c.l.b16 %v56
    %v345 = vunpack.c.l.b16 %v57
    %v346 = vunpack.c.l.b16 %v58
    %v347 = vunpack.c.l.b16 %v59
    %v348 = vunpack.c.l.b16 %v60
    %v349 = vunpack.c.l.b16 %v61
    %v350 = vunpack.c.l.b16 %v62
    %v351 = vunpack.c.l.b16 %v63
    %v352 = vunpack.c.l.b16 %v64
    %v353 = vunpack.c.l.b16 %v65
    %v354 = vunpack.c.l.b16 %v66
    %v355 = vunpack.c.l.b16 %v67
    %v356 = vunpack.c.l.b16 %v68
    %v357 = vunpack.c.l.b16 %v69
    %v358 = vunpack.c.l.b16 %v70
    %v359 = vunpack.c.l.b16 %v71
    %v360 = vunpack.c.l.b16 %v72
    %v361 = vunpack.c.l.b16 %v73
    %v362 = vunpack.c.l.b16 %v74
    %v363 = vunpack.c.l.b16 %v75
    %v364 = vunpack.c.l.b16 %v76
    %v365 = vunpack.c.l.b16 %v77
    %v366 = vunpack.c.l.b16 %v78
    %v367 = vunpack.c.l.b16 %v79
    %v368 = vunpack.c.l.b16 %v80
    %v369 = vunpack.c.l.b16 %v81
    %v370 = vunpack.c.l.b16 %v82
    %v371 = vunpack.c.l.b16 %v83
    %v372 = vunpack.c.l.b16 %v84
    %v373 = vunpack.c.l.b16 %v85
    %v374 = vunpack.c.l.b16 %v86
    %v375 = vunpack.c.l.b16 %v87
    %v376 = vunpack.c.l.b16 %v88
    %v377 = vunpack.c.l.b16 %v89
    %v378 = vunpack.c.l.b16 %v90
    %v379 = vunpack.c.l.b16 %v91
    %v380 = vunpack.c.l.b16 %v92
    %v381 = vunpack.c.l.b16 %v93
    %v382 = vunpack.c.l.b16 %v94
    %v383 = vunpack.c.l.b16 %v95
    %v384 = vunpack.c.l.b16 %v96
    %v385 = vunpack.c.l.b16 %v97
    %v386 = vunpack.c.l.b16 %v98
    %v387 = vunpack.c.l.b16 %v99
    %v388 = vunpack.c.l.b16 %v100
    %v389 = vunpack.c.l.b16 %v101
    %v390 = vunpack.c.l.b16 %v102
    %v391 = vunpack.c.l.b16 %v103
    %v392 = vunpack.c.l.b16 %v104
    %v393 = vunpack.c.l.b16 %v105
    %v394 = vunpack.c.l.b16 %v106
    %v395 = vunpack.c.l.b16 %v107
    %v396 = vunpack.c.l.b16 %v108
    %v397 = vunpack.c.l.b16 %v109
    %v398 = vunpack.c.l.b16 %v110
    %v399 = vunpack.c.l.b16 %v111
    %v400 = vunpack.c.l.b16 %v112
    %v401 = vunpack.c.l.b16 %v113
    %v402 = vunpack.c.l.b16 %v114
    %v403 = vunpack.c.l.b16 %v115
    %v404 = vunpack.c.l.b16 %v116
    %v405 = vunpack.c.l.b16 %v117
    %v406 = vunpack.c.l.b16 %v118
    %v407 = vunpack.c.l.b16 %v119
    %v408 = vunpack.c.l.b16 %v120
    %v409 = vunpack.c.l.b16 %v121
    %v410 = vunpack.c.l.b16 %v122
    %v411 = vunpack.c.l.b16 %v123
    %v412 = vunpack.c.l.b16 %v124
    %v413 = vunpack.c.l.b16 %v125
    %v414 = vunpack.c.l.b16 %v126
    %v415 = vunpack.c.l.b16 %v127
    %v416 = vunpack.c.l.b16 %v128
    %v417 = vunpack.c.l.b16 %v129
    %v418 = vunpack.c.l.b16 %v130
    %v419 = vunpack.c.l.b16 %v131
    %v420 = vunpack.c.l.b16 %v132
    %v421 = vunpack.c.l.b16 %v133
    %v422 = vunpack.c.l.b16 %v134
    %v423 = vunpack.c.l.b16 %v135
    %v424 = vunpack.c.l.b16 %v136
    %v425 = vunpack.c.l.b16 %v137
    %v426 = vunpack.c.l.b16 %v138
    %v427 = vunpack.c.l.b16 %v139
    %v428 = vunpack.c.l.b16 %v140
    %v429 = vunpack.c.l.b16 %v141
    %v430 = vunpack.c.l.b16 %v142
    %v431 = vunpack.c.l.b16 %v143
    %v432 = vunpack.c.l.b16 %v144
    %v433 = vunpack.c.l.b16 %v145
    %v434 = vunpack.c.l.b16 %v146
    %v435 = vunpack.c.l.b16 %v147
    %v436 = vunpack.c.l.b16 %v148
    %v437 = vunpack.c.l.b16 %v149
    %v438 = vunpack.c.l.b16 %v150
    %v439 = vunpack.c.l.b16 %v151
    %v440 = vunpack.c.l.b16 %v152
    %v441 = vunpack.c.l.b16 %v153
    %v442 = vunpack.c.l.b16 %v154
    %v443 = vunpack.c.l.b16 %v155
    %v444 = vunpack.c.l.b16 %v156
    %v445 = vunpack.c.l.b16 %v157
    %v446 = vunpack.c.l.b16 %v158
    %v447 = vunpack.c.l.b16 %v159
    %v448 = vunpack.c.l.b16 %v160
    %v449 = vunpack.c.l.b16 %v161
    %v450 = vunpack.c.l.b16 %v162
    %v451 = vunpack.c.l.b16 %v163
    %v452 = vunpack.c.l.b16 %v164
    %v453 = vunpack.c.l.b16 %v165
    %v454 = vunpack.c.l.b16 %v166
    %v455 = vunpack.c.l.b16 %v167
    %v456 = vpack.c.b16 %v329, %v328
    %v457 = vpack.c.b16 %v331, %v330
    %v458 = vpack.c.b16 %v333, %v332
    %v459 = vpack.c.b16 %v335, %v334
    %v460 = vpack.c.b16 %v337, %v336
    %v461 = vpack.c.b16 %v339, %v338
    %v462 = vpack.c.b16 %v341, %v340
    %v463 = vpack.c.b16 %v343, %v342
    %v464 = vpack.c.b16 %v345, %v344
    %v465 = vpack.c.b16 %v347, %v346
    %v466 = vpack.c.b16 %v349, %v348
    %v467 = vpack.c.b16 %v351, %v350
    %v468 = vpack.c.b16 %v353, %v352
    %v469 = vpack.c.b16 %v355, %v354
    %v470 = vpack.c.b16 %v357, %v356
    %v471 = vpack.c.b16 %v359, %v358
    %v472 = vpack.c.b16 %v361, %v360
    %v473 = vpack.c.b16 %v363, %v362
    %v474 = vpack.c.b16 %v365, %v364
    %v475 = vpack.c.b16 %v367, %v366
    %v476 = vpack.c.b16 %v369, %v368
    %v477 = vpack.c.b16 %v371, %v370
    %v478 = vpack.c.b16 %v373, %v372
    %v479 = vpack.c.b16 %v375, %v374
    %v480 = vpack.c.b16 %v377, %v376
    %v481 = vpack.c.b16 %v379, %v378
    %v482 = vpack.c.b16 %v381, %v380
    %v483 = vpack.c.b16 %v383, %v382
    %v484 = vpack.c.b16 %v385, %v384
    %v485 = vpack.c.b16 %v387, %v386
    %v486 = vpack.c.b16 %v389, %v388
    %v487 = vpack.c.b16 %v391, %v390
    %v488 = vpack.c.b16 %v393, %v392
    %v489 = vpack.c.b16 %v395, %v394
    %v490 = vpack.c.b16 %v397, %v396
    %v491 = vpack.c.b16 %v399, %v398
    %v492 = vpack.c.b16 %v401, %v400
    %v493 = vpack.c.b16 %v403, %v402
    %v494 = vpack.c.b16 %v405, %v404
    %v495 = vpack.c.b16 %v407, %v406
    %v496 = vpack.c.b16 %v409, %v408
    %v497 = vpack.c.b16 %v411, %v410
    %v498 = vpack.c.b16 %v413, %v412
    %v499 = vpack.c.b16 %v415, %v414
    %v500 = vpack.c.b16 %v417, %v416
    %v501 = vpack.c.b16 %v419, %v418
    %v502 = vpack.c.b16 %v421, %v420
    %v503 = vpack.c.b16 %v423, %v422
    %v504 = vpack.c.b16 %v425, %v424
    %v505 = vpack.c.b16 %v427, %v426
    %v506 = vpack.c.b16 %v429, %v428
    %v507 = vpack.c.b16 %v431, %v430
    %v508 = vpack.c.b16 %v433, %v432
    %v509 = vpack.c.b16 %v435, %v434
    %v510 = vpack.c.b16 %v437, %v436
    %v511 = vpack.c.b16 %v439, %v438
    %v512 = vpack.c.b16 %v441, %v440
    %v513 = vpack.c.b16 %v443, %v442
    %v514 = vpack.c.b16 %v445, %v444
    %v515 = vpack.c.b16 %v447, %v446
    %v516 = vpack.c.b16 %v449, %v448
    %v517 = vpack.c.b16 %v451, %v450
    %v518 = vpack.c.b16 %v453, %v452
    %v519 = vpack.c.b16 %v455, %v454
    %584 = vmatpush.bf16.msra.mxu0 %v463
    %585 = vmatpush.bf16.msra.mxu0 %v462
    %586 = vmatpush.bf16.msra.mxu0 %v461
    %587 = vmatpush.bf16.msra.mxu0 %v460
    %588 = vmatpush.bf16.msra.mxu0 %v459
    %589 = vmatpush.bf16.msra.mxu0 %v458
    %590 = vmatpush.bf16.msra.mxu0 %v457
    %591 = vmatpush.bf16.msra.mxu0 %v456
    %592 = vmatmul.bf16.gmra.mxu0 %v184
    %v593 = vpop.f32.mrf.mxu0
    %v594 = vadd.f32 %v170, %v593
    %v595 = vpop.f32.mrf.mxu0
    %596 = vdwg.mxu0
    %597 = vmatpush.bf16.msra.mxu0 %v471
    %598 = vmatpush.bf16.msra.mxu0 %v470
    %599 = vmatpush.bf16.msra.mxu0 %v469
    %600 = vmatpush.bf16.msra.mxu0 %v468
    %601 = vmatpush.bf16.msra.mxu0 %v467
    %602 = vmatpush.bf16.msra.mxu0 %v466
    %603 = vmatpush.bf16.msra.mxu0 %v465
    %604 = vmatpush.bf16.msra.mxu0 %v464
    %605 = vmatmul.bf16.gmra.mxu0 %v185
    %v606 = vpop.f32.mrf.mxu0
    %v607 = vadd.f32 %v594, %v606
    %v608 = vpop.f32.mrf.mxu0
    %609 = vdwg.mxu0
    %610 = vmatpush.bf16.msra.mxu0 %v479
    %611 = vmatpush.bf16.msra.mxu0 %v478
    %612 = vmatpush.bf16.msra.mxu0 %v477
    %613 = vmatpush.bf16.msra.mxu0 %v476
    %614 = vmatpush.bf16.msra.mxu0 %v475
    %615 = vmatpush.bf16.msra.mxu0 %v474
    %616 = vmatpush.bf16.msra.mxu0 %v473
    %617 = vmatpush.bf16.msra.mxu0 %v472
    %618 = vmatmul.bf16.gmra.mxu0 %v186
    %v619 = vpop.f32.mrf.mxu0
    %v620 = vadd.f32 %v607, %v619
    %v621 = vpop.f32.mrf.mxu0
    %622 = vdwg.mxu0
    %623 = vmatpush.bf16.msra.mxu0 %v487
    %624 = vmatpush.bf16.msra.mxu0 %v486
    %625 = vmatpush.bf16.msra.mxu0 %v485
    %626 = vmatpush.bf16.msra.mxu0 %v484
    %627 = vmatpush.bf16.msra.mxu0 %v483
    %628 = vmatpush.bf16.msra.mxu0 %v482
    %629 = vmatpush.bf16.msra.mxu0 %v481
    %630 = vmatpush.bf16.msra.mxu0 %v480
    %631 = vmatmul.bf16.gmra.mxu0 %v187
    %v632 = vpop.f32.mrf.mxu0
    %v633 = vadd.f32 %v620, %v632
    %v634 = vpop.f32.mrf.mxu0
    %635 = vdwg.mxu0
    %636 = vmatpush.bf16.msra.mxu0 %v495
    %637 = vmatpush.bf16.msra.mxu0 %v494
    %638 = vmatpush.bf16.msra.mxu0 %v493
    %639 = vmatpush.bf16.msra.mxu0 %v492
    %640 = vmatpush.bf16.msra.mxu0 %v491
    %641 = vmatpush.bf16.msra.mxu0 %v490
    %642 = vmatpush.bf16.msra.mxu0 %v489
    %643 = vmatpush.bf16.msra.mxu0 %v488
    %644 = vmatmul.bf16.gmra.mxu0 %v188
    %v645 = vpop.f32.mrf.mxu0
    %v646 = vadd.f32 %v633, %v645
    %v647 = vpop.f32.mrf.mxu0
    %648 = vdwg.mxu0
    %649 = vmatpush.bf16.msra.mxu0 %v503
    %650 = vmatpush.bf16.msra.mxu0 %v502
    %651 = vmatpush.bf16.msra.mxu0 %v501
    %652 = vmatpush.bf16.msra.mxu0 %v500
    %653 = vmatpush.bf16.msra.mxu0 %v499
    %654 = vmatpush.bf16.msra.mxu0 %v498
    %655 = vmatpush.bf16.msra.mxu0 %v497
    %656 = vmatpush.bf16.msra.mxu0 %v496
    %657 = vmatmul.bf16.gmra.mxu0 %v189
    %v658 = vpop.f32.mrf.mxu0
    %v659 = vadd.f32 %v646, %v658
    %v660 = vpop.f32.mrf.mxu0
    %661 = vdwg.mxu0
    %662 = vmatpush.bf16.msra.mxu0 %v511
    %663 = vmatpush.bf16.msra.mxu0 %v510
    %664 = vmatpush.bf16.msra.mxu0 %v509
    %665 = vmatpush.bf16.msra.mxu0 %v508
    %666 = vmatpush.bf16.msra.mxu0 %v507
    %667 = vmatpush.bf16.msra.mxu0 %v506
    %668 = vmatpush.bf16.msra.mxu0 %v505
    %669 = vmatpush.bf16.msra.mxu0 %v504
    %670 = vmatmul.bf16.gmra.mxu0 %v190
    %v671 = vpop.f32.mrf.mxu0
    %v672 = vadd.f32 %v659, %v671
    %v673 = vpop.f32.mrf.mxu0
    %674 = vdwg.mxu0
    %675 = vmatpush.bf16.msra.mxu0 %v519
    %676 = vmatpush.bf16.msra.mxu0 %v518
    %677 = vmatpush.bf16.msra.mxu0 %v517
    %678 = vmatpush.bf16.msra.mxu0 %v516
    %679 = vmatpush.bf16.msra.mxu0 %v515
    %680 = vmatpush.bf16.msra.mxu0 %v514
    %681 = vmatpush.bf16.msra.mxu0 %v513
    %682 = vmatpush.bf16.msra.mxu0 %v512
    %683 = vmatmul.bf16.gmra.mxu0 %v191
    %v684 = vpop.f32.mrf.mxu0
    %v685 = vadd.f32 %v672, %v684
    %v686 = vpop.f32.mrf.mxu0
    %687 = vdwg.mxu0
    %v688 = vmax.f32 %v685, 0.0
    %v689 = vpack.c.bf16 %v688, %v688
    %v690 = vld [vmem:[%s3] sm:$0xff]
    %v691 = vld [vmem:[%s3 + $0x8] sm:$0xff]
    %v692 = vld [vmem:[%s3 + $0x10] sm:$0xff]
    %v693 = vld [vmem:[%s3 + $0x18] sm:$0xff]
    %v694 = vld [vmem:[%s3 + $0x20] sm:$0xff]
    %v695 = vld [vmem:[%s3 + $0x28] sm:$0xff]
    %v696 = vld [vmem:[%s3 + $0x30] sm:$0xff]
    %v697 = vld [vmem:[%s3 + $0x38] sm:$0xff]
    %v698 = vld [vmem:[%s3 + $0x40] sm:$0xff]
    %v699 = vld [vmem:[%s3 + $0x48] sm:$0xff]
    %v700 = vld [vmem:[%s3 + $0x50] sm:$0xff]
    %v701 = vld [vmem:[%s3 + $0x58] sm:$0xff]
    %v702 = vld [vmem:[%s3 + $0x60] sm:$0xff]
    %v703 = vld [vmem:[%s3 + $0x68] sm:$0xff]
    %v704 = vld [vmem:[%s3 + $0x70] sm:$0xff]
    %v705 = vld [vmem:[%s3 + $0x78] sm:$0xff]
    %v706 = vld [vmem:[%s4] sm:$0x3]
    %v708 = vperm.slane %v706, 0
    %v709 = vperm.slane %v706, 1
    %v728 = vunpack.c.l.b16 %v690
    %v729 = vunpack.c.h.b16 %v690
    %v730 = vunpack.c.l.b16 %v691
    %v731 = vunpack.c.h.b16 %v691
    %v732 = vunpack.c.l.b16 %v692
    %v733 = vunpack.c.h.b16 %v692
    %v734 = vunpack.c.l.b16 %v693
    %v735 = vunpack.c.h.b16 %v693
    %v736 = vunpack.c.l.b16 %v694
    %v737 = vunpack.c.h.b16 %v694
    %v738 = vunpack.c.l.b16 %v695
    %v739 = vunpack.c.h.b16 %v695
    %v740 = vunpack.c.l.b16 %v696
    %v741 = vunpack.c.h.b16 %v696
    %v742 = vunpack.c.l.b16 %v697
    %v743 = vunpack.c.h.b16 %v697
    %v744 = vunpack.c.l.b16 %v698
    %v745 = vunpack.c.h.b16 %v698
    %v746 = vunpack.c.l.b16 %v699
    %v747 = vunpack.c.h.b16 %v699
    %v748 = vunpack.c.l.b16 %v700
    %v749 = vunpack.c.h.b16 %v700
    %v750 = vunpack.c.l.b16 %v701
    %v751 = vunpack.c.h.b16 %v701
    %v752 = vunpack.c.l.b16 %v702
    %v753 = vunpack.c.h.b16 %v702
    %v754 = vunpack.c.l.b16 %v703
    %v755 = vunpack.c.h.b16 %v703
    %v756 = vunpack.c.l.b16 %v704
    %v757 = vunpack.c.h.b16 %v704
    %v758 = vunpack.c.l.b16 %v705
    %v759 = vunpack.c.h.b16 %v705
    %v760 = vpack.c.b16 %v730, %v728
    %v761 = vpack.c.b16 %v731, %v729
    %v762 = vpack.c.b16 %v734, %v732
    %v763 = vpack.c.b16 %v735, %v733
    %v764 = vpack.c.b16 %v738, %v736
    %v765 = vpack.c.b16 %v739, %v737
    %v766 = vpack.c.b16 %v742, %v740
    %v767 = vpack.c.b16 %v743, %v741
    %v768 = vpack.c.b16 %v746, %v744
    %v769 = vpack.c.b16 %v747, %v745
    %v770 = vpack.c.b16 %v750, %v748
    %v771 = vpack.c.b16 %v751, %v749
    %v772 = vpack.c.b16 %v754, %v752
    %v773 = vpack.c.b16 %v755, %v753
    %v774 = vpack.c.b16 %v758, %v756
    %v775 = vpack.c.b16 %v759, %v757
    %792 = vmatpush.bf16.msra.mxu0 %v774
    %793 = vmatpush.bf16.msra.mxu0 %v772
    %794 = vmatpush.bf16.msra.mxu0 %v770
    %795 = vmatpush.bf16.msra.mxu0 %v768
    %796 = vmatpush.bf16.msra.mxu0 %v766
    %797 = vmatpush.bf16.msra.mxu0 %v764
    %798 = vmatpush.bf16.msra.mxu0 %v762
    %799 = vmatpush.bf16.msra.mxu0 %v760
    %800 = vmatmul.bf16.gmra.mxu0 %v689
    %v801 = vpop.f32.mrf.mxu0
    %v802 = vadd.f32 %v708, %v801
    %v803 = vpop.f32.mrf.mxu0
    %804 = vdwg.mxu0
    %805 = vmatpush.bf16.msra.mxu0 %v775
    %806 = vmatpush.bf16.msra.mxu0 %v773
    %807 = vmatpush.bf16.msra.mxu0 %v771
    %808 = vmatpush.bf16.msra.mxu0 %v769
    %809 = vmatpush.bf16.msra.mxu0 %v767
    %810 = vmatpush.bf16.msra.mxu0 %v765
    %811 = vmatpush.bf16.msra.mxu0 %v763
    %812 = vmatpush.bf16.msra.mxu0 %v761
    %813 = vmatmul.bf16.gmra.mxu0 %v689
    %v814 = vpop.f32.mrf.mxu0
    %v815 = vadd.f32 %v709, %v814
    %v816 = vpop.f32.mrf.mxu0
    %817 = vdwg.mxu0
    %818 = vmax.xlane.f32.xlu0 %v802
    %v819 = vpop.xlane.xlu0 %818
    %v820 = vsub.f32 %v802, %v819
    %v821 = vmul.f32 %v820, 1.442695
    %v822 = vpow.pop %v821
    %823 = vadd.xlane.f32.xlu0 %v822
    %v824 = vpop.xlane.xlu0 %823
    %v825 = vlog2.pop %v824
    %v826 = vmul.f32 %v825, 0.6931472
    %v827 = vsub.f32 %v820, %v826
    %828 = vst [vmem:[%s5] sm:$0xff] %v827
    %829 = vmax.xlane.f32.xlu0 %v815
    %v830 = vpop.xlane.xlu0 %829
    %v831 = vsub.f32 %v815, %v830
    %v832 = vmul.f32 %v831, 1.442695
    %v833 = vpow.pop %v832
    %834 = vadd.xlane.f32.xlu0 %v833
    %v835 = vpop.xlane.xlu0 %834
    %v836 = vlog2.pop %v835
    %v837 = vmul.f32 %v836, 0.6931472
    %v838 = vsub.f32 %v831, %v837
    %839 = vst [vmem:[%s5 + $0x8] sm:$0xff] %v838
    // Predicated region
    $region26: #{sdmd_mlp_forward.1} parent=1 // pred_check
      _
    $region27: #{sdmd_mlp_forward.1} parent=1 // pred_check_branch
      %841 = sbr.rel (0) target = $region29
    $region28: #{sdmd_mlp_forward.1} parent=1 // pred_region
      _
    $region29: #{sdmd_mlp_forward.1} parent=1 // pred_fallthru
      _
    // Predicated region
    $region30: #{sdmd_mlp_forward.1} parent=1 // pred_check
      _
    $region31: #{sdmd_mlp_forward.1} parent=1 // pred_check_branch
      %843 = sbr.rel (0) target = $region33
    $region32: #{sdmd_mlp_forward.1} parent=1 // pred_region
      _
    $region33: #{sdmd_mlp_forward.1} parent=1 // pred_fallthru
      _
    %844 = vsyncpa [#allocation3], 1

</llo_original>
